<compile_context>
chip_gen: v7x
topology: tpu7x:2x2x1
jax: 0.10.0
libtpu: 0.0.40
codegen_flags: <defaults>
</compile_context>

<pallas_src>
import functools

import jax
import jax.numpy as jnp
from jax import lax
from jax.experimental import pallas as pl
from jax.experimental.pallas import tpu as pltpu

EPS = 1e-16


def _round_up(x, m):
    return (x + m - 1) // m * m


def _ce_adjusted_kernel(logits_ref, targs_ref, adj_ref, out_ref, *, true_b, tile_b):
    # logits_ref : [TILE_B, C]  storage dtype (bf16/f32), ragged last tile possible
    # targs_ref  : [TILE_B, 1]  i32 target class ids
    # adj_ref    : [TILE_B, 1]  f32 log(country_weights[targ, country] + eps)
    # out_ref    : [8, 128]     f32 per-tile partial sum (broadcast-filled)
    i = pl.program_id(0)

    xs = logits_ref[...]                                   # [TB, C] storage dtype
    tb, c = xs.shape

    # ---- log-softmax pieces (max in storage dtype, rest in f32) ----
    m = jnp.max(xs, axis=1, keepdims=True).astype(jnp.float32)      # [TB, 1]
    z = xs.astype(jnp.float32) - m                                  # [TB, C]
    lse = jnp.log(jnp.sum(jnp.exp(z), axis=1, keepdims=True))       # [TB, 1]

    # ---- target log-prob: compare + select + reduce ----
    targs = targs_ref[...]                                          # [TB, 1] i32
    t_mask = targs == lax.broadcasted_iota(jnp.int32, (tb, c), 1)
    z_t = jnp.sum(jnp.where(t_mask, z, 0.0), axis=1, keepdims=True)
    logp_t = z_t - lse                                              # [TB, 1]

    # ---- mask rows beyond the true batch (ragged last tile reads garbage) ----
    # Must be a select (not a multiply) so NaN/Inf garbage never propagates.
    row = i * tile_b + lax.broadcasted_iota(jnp.int32, (tb, 1), 0)
    per_row = jnp.where(row < true_b, logp_t + adj_ref[...], 0.0)   # [TB, 1]

    tile_sum = jnp.sum(per_row, axis=0, keepdims=True)              # (1, 1)
    out_ref[...] = jnp.broadcast_to(tile_sum, out_ref.shape)


def _choose_tile_b(B, C, tile_b):
    c_lanes = _round_up(C, 128)
    if tile_b is None:
        # ~4 MiB of f32 [TB, C_lanes] temporaries per grid step, 8..4096 rows.
        rows = (4 * 1024 * 1024) // (c_lanes * 4)
        tile_b = max(8, min(4096, (rows // 8) * 8))
    tile_b = max(8, (int(tile_b) // 8) * 8)
    if B >= 8:
        tile_b = min(tile_b, (B // 8) * 8)     # keep block <= array, multiple of 8
    else:
        tile_b = B                             # block equals full array dim
    return tile_b


def cross_entropy_loss_adjusted(logits, country_weights, country, targs,
                                *, tile_b=None):
    """logits [B,C] (any float dtype), country_weights [C,NC] (positive),
    country [B] int, targs [B] int  ->  scalar f32 mean loss."""
    B, C = logits.shape
    country_i = country.astype(jnp.int32)
    targs_i = targs.astype(jnp.int32)

    # Hoisted: tiny [C, NC] log, then O(B) gather of the final per-row scalar
    # adjustment (kernel only needs the O(B*C) logits stream + two [B,1] vectors).
    log_cw = jnp.log(country_weights.astype(jnp.float32) + EPS)      # [C, NC]
    adj = log_cw[targs_i, country_i].reshape(B, 1)                   # [B, 1] f32

    tile_b = _choose_tile_b(B, C, tile_b)
    num_tiles = pl.cdiv(B, tile_b)

    # Generation-aware VMEM budget (~0.72x physical: ~46 MiB v7x, ~92 MiB v5e/v6e).
    try:
        phys_vmem = int(pltpu.get_tpu_info().vmem_capacity_bytes)
    except Exception:
        phys_vmem = 64 * 1024 * 1024
    vmem_limit = max(16 * 1024 * 1024,
                     min(int(0.72 * phys_vmem), 96 * 1024 * 1024))

    kernel = functools.partial(_ce_adjusted_kernel, true_b=B, tile_b=tile_b)

    out = pl.pallas_call(
        kernel,
        out_shape=jax.ShapeDtypeStruct((num_tiles * 8, 128), jnp.float32),
        grid_spec=pltpu.PrefetchScalarGridSpec(
            num_scalar_prefetch=0,
            grid=(num_tiles,),
            in_specs=[
                pl.BlockSpec((tile_b, C), lambda i: (i, 0)),   # logits (native dtype, no pad)
                pl.BlockSpec((tile_b, 1), lambda i: (i, 0)),   # target ids
                pl.BlockSpec((tile_b, 1), lambda i: (i, 0)),   # per-row log-weight adj
            ],
            out_specs=pl.BlockSpec((8, 128), lambda i: (i, 0)),  # per-tile partials
        ),
        compiler_params=pltpu.CompilerParams(
            dimension_semantics=("parallel",),    # batch tiles shard across TCs (v7x)
            vmem_limit_bytes=vmem_limit,
        ),
    )(logits, targs_i.reshape(B, 1), adj)

    partials = out[0::8, 0]                       # [num_tiles] per-tile sums
    return -(jnp.sum(partials) / jnp.float32(B))


def _reference_loss(logits, country_weights, country, targs):
    """Pure-JAX reference mirroring the PyTorch forward (f32 math)."""
    ls = jax.nn.log_softmax(logits.astype(jnp.float32), axis=1)
    cw_g = country_weights.astype(jnp.float32)[:, country].T      # [B, C]
    adjusted = ls + jnp.log(cw_g + EPS)
    picked = jnp.take_along_axis(adjusted, targs[:, None], axis=1)[:, 0]
    return -jnp.mean(picked)


if __name__ == "__main__":
    key = jax.random.PRNGKey(0)
    k1, k2, k3, k4 = jax.random.split(key, 4)

    # --- test 1: f32 logits, single tile ---
    B, C, NC = 8, 32, 8
    logits = jax.random.normal(k1, (B, C), dtype=jnp.float32)
    country_weights = jax.random.uniform(k2, (C, NC), dtype=jnp.float32,
                                         minval=0.1, maxval=1.0)
    country = jax.random.randint(k3, (B,), 0, NC, dtype=jnp.int32)
    targs = jax.random.randint(k4, (B,), 0, C, dtype=jnp.int32)

    loss = jax.block_until_ready(
        cross_entropy_loss_adjusted(logits, country_weights, country, targs))
    ref = _reference_loss(logits, country_weights, country, targs)
    assert jnp.allclose(loss, ref, rtol=1e-5, atol=1e-5), (loss, ref)

    # --- test 2: bf16 logits, ragged batch (no padding; garbage rows masked) ---
    B2 = 10
    k5, k6, k7 = jax.random.split(k1, 3)
    logits2 = jax.random.normal(k5, (B2, C), dtype=jnp.bfloat16)
    country2 = jax.random.randint(k6, (B2,), 0, NC, dtype=jnp.int32)
    targs2 = jax.random.randint(k7, (B2,), 0, C, dtype=jnp.int32)
    loss2 = jax.block_until_ready(
        cross_entropy_loss_adjusted(logits2, country_weights, country2, targs2))
    ref2 = _reference_loss(logits2, country_weights, country2, targs2)
    assert jnp.allclose(loss2, ref2, rtol=1e-4, atol=1e-4), (loss2, ref2)

    # --- test 3: multiple grid tiles (explicit tile_b), ragged last tile ---
    B3 = 20
    k8, k9, k10 = jax.random.split(k2, 3)
    logits3 = jax.random.normal(k8, (B3, C), dtype=jnp.float32)
    country3 = jax.random.randint(k9, (B3,), 0, NC, dtype=jnp.int32)
    targs3 = jax.random.randint(k10, (B3,), 0, C, dtype=jnp.int32)
    loss3 = jax.block_until_ready(
        cross_entropy_loss_adjusted(logits3, country_weights, country3, targs3,
                                    tile_b=8))
    ref3 = _reference_loss(logits3, country_weights, country3, targs3)
    assert jnp.allclose(loss3, ref3, rtol=1e-5, atol=1e-5), (loss3, ref3)

    # --- test 4: non-lane-aligned class count (C=150), default tile heuristic ---
    B4, C4 = 200, 150
    k11, k12, k13, k14 = jax.random.split(k3, 4)
    logits4 = jax.random.normal(k11, (B4, C4), dtype=jnp.float32)
    cw4 = jax.random.uniform(k12, (C4, NC), dtype=jnp.float32,
                             minval=0.1, maxval=1.0)
    country4 = jax.random.randint(k13, (B4,), 0, NC, dtype=jnp.int32)
    targs4 = jax.random.randint(k14, (B4,), 0, C4, dtype=jnp.int32)
    loss4 = jax.block_until_ready(
        cross_entropy_loss_adjusted(logits4, cw4, country4, targs4))
    ref4 = _reference_loss(logits4, cw4, country4, targs4)
    assert jnp.allclose(loss4, ref4, rtol=1e-5, atol=1e-5), (loss4, ref4)

    # --- test 5: tiny batch (B < 8, block equals full array dims) ---
    B5 = 5
    k15, k16, k17 = jax.random.split(k4, 3)
    logits5 = jax.random.normal(k15, (B5, C), dtype=jnp.float32)
    country5 = jax.random.randint(k16, (B5,), 0, NC, dtype=jnp.int32)
    targs5 = jax.random.randint(k17, (B5,), 0, C, dtype=jnp.int32)
    loss5 = jax.block_until_ready(
        cross_entropy_loss_adjusted(logits5, country_weights, country5, targs5))
    ref5 = _reference_loss(logits5, country_weights, country5, targs5)
    assert jnp.allclose(loss5, ref5, rtol=1e-5, atol=1e-5), (loss5, ref5)

    print("KERNEL_OK")
</pallas_src>

<mosaic_0001>
module attributes {stable_mosaic.version = 11 : i64} {
  func.func @_ce_adjusted_kernel(%arg0: i32, %arg1: memref<8x32xf32, #tpu.memory_space<vmem>>, %arg2: memref<8x1xi32, #tpu.memory_space<vmem>>, %arg3: memref<8x1xf32, #tpu.memory_space<vmem>>, %arg4: memref<8x128xf32, #tpu.memory_space<vmem>>) attributes {dimension_semantics = [#tpu.dimension_semantics<parallel>], iteration_bounds = array<i64: 1>, scalar_prefetch = 0 : i64, scratch_operands = 0 : i64, tpu.core_type = #tpu.core_type<tc>, window_params = [{transform_indices = @transform_0, window_bounds = array<i64: 8, 32>}, {transform_indices = @transform_1, window_bounds = array<i64: 8, 1>}, {transform_indices = @transform_2, window_bounds = array<i64: 8, 1>}, {transform_indices = @transform_3, window_bounds = array<i64: 8, 128>}]} {
    %c0 = arith.constant 0 : index
    %c0_0 = arith.constant 0 : index
    %0 = vector.load %arg1[%c0, %c0_0] : memref<8x32xf32, #tpu.memory_space<vmem>>, vector<8x32xf32>
    %cst = arith.constant dense<0xFF800000> : vector<8xf32>
    %1 = vector.multi_reduction <maximumf>, %0, %cst [1] : vector<8x32xf32> to vector<8xf32>
    %2 = vector.shape_cast %1 : vector<8xf32> to vector<8x1xf32>
    %3 = vector.broadcast %2 : vector<8x1xf32> to vector<8x32xf32>
    %4 = arith.subf %0, %3 : vector<8x32xf32>
    %5 = math.exp %4 : vector<8x32xf32>
    %cst_1 = arith.constant dense<0.000000e+00> : vector<8xf32>
    %6 = vector.multi_reduction <add>, %5, %cst_1 [1] : vector<8x32xf32> to vector<8xf32>
    %7 = vector.shape_cast %6 : vector<8xf32> to vector<8x1xf32>
    %8 = math.log %7 : vector<8x1xf32>
    %c0_2 = arith.constant 0 : index
    %c0_3 = arith.constant 0 : index
    %9 = vector.load %arg2[%c0_2, %c0_3] : memref<8x1xi32, #tpu.memory_space<vmem>>, vector<8x1xi32>
    %10 = tpu.iota {dimensions = array<i32: 1>} : vector<8x32xi32>
    %11 = vector.broadcast %9 : vector<8x1xi32> to vector<8x32xi32>
    %12 = arith.cmpi eq, %11, %10 : vector<8x32xi32>
    %cst_4 = arith.constant 0.000000e+00 : f32
    %13 = vector.broadcast %cst_4 : f32 to vector<8x32xf32>
    %14 = arith.select %12, %4, %13 : vector<8x32xi1>, vector<8x32xf32>
    %cst_5 = arith.constant dense<0.000000e+00> : vector<8xf32>
    %15 = vector.multi_reduction <add>, %14, %cst_5 [1] : vector<8x32xf32> to vector<8xf32>
    %16 = vector.shape_cast %15 : vector<8xf32> to vector<8x1xf32>
    %17 = arith.subf %16, %8 : vector<8x1xf32>
    %c8_i32 = arith.constant 8 : i32
    %18 = arith.muli %arg0, %c8_i32 : i32
    %19 = tpu.iota {dimensions = array<i32: 0>} : vector<8x1xi32>
    %20 = vector.broadcast %18 : i32 to vector<8x1xi32>
    %21 = arith.addi %20, %19 : vector<8x1xi32>
    %c8_i32_6 = arith.constant 8 : i32
    %22 = vector.broadcast %c8_i32_6 : i32 to vector<8x1xi32>
    %23 = arith.cmpi slt, %21, %22 : vector<8x1xi32>
    %c0_7 = arith.constant 0 : index
    %c0_8 = arith.constant 0 : index
    %24 = vector.load %arg3[%c0_7, %c0_8] : memref<8x1xf32, #tpu.memory_space<vmem>>, vector<8x1xf32>
    %25 = arith.addf %17, %24 : vector<8x1xf32>
    %cst_9 = arith.constant 0.000000e+00 : f32
    %26 = vector.broadcast %cst_9 : f32 to vector<8x1xf32>
    %27 = arith.select %23, %25, %26 : vector<8x1xi1>, vector<8x1xf32>
    %cst_10 = arith.constant dense<0.000000e+00> : vector<1xf32>
    %28 = vector.multi_reduction <add>, %27, %cst_10 [0] : vector<8x1xf32> to vector<1xf32>
    %29 = vector.shape_cast %28 : vector<1xf32> to vector<1x1xf32>
    %30 = vector.shape_cast %29 : vector<1x1xf32> to vector<1x1xf32>
    %31 = vector.broadcast %30 : vector<1x1xf32> to vector<8x128xf32>
    %c0_11 = arith.constant 0 : index
    %c0_12 = arith.constant 0 : index
    %32 = vector.load %arg4[%c0_11, %c0_12] : memref<8x128xf32, #tpu.memory_space<vmem>>, vector<8x128xf32>
    tpu.vector_store %arg4[%c0_11, %c0_12], %31 {strides = array<i32>} : memref<8x128xf32, #tpu.memory_space<vmem>>, vector<8x128xf32>,
    return
  }
  func.func @transform_0(%arg0: i32) -> (i32, i32) {
    %c0_i32 = arith.constant 0 : i32
    %c0_i32_0 = arith.constant 0 : i32
    return %arg0, %c0_i32 : i32, i32
  }
  func.func @transform_1(%arg0: i32) -> (i32, i32) {
    %c0_i32 = arith.constant 0 : i32
    %c0_i32_0 = arith.constant 0 : i32
    return %arg0, %c0_i32 : i32, i32
  }
  func.func @transform_2(%arg0: i32) -> (i32, i32) {
    %c0_i32 = arith.constant 0 : i32
    %c0_i32_0 = arith.constant 0 : i32
    return %arg0, %c0_i32 : i32, i32
  }
  func.func @transform_3(%arg0: i32) -> (i32, i32) {
    %c0_i32 = arith.constant 0 : i32
    %c0_i32_0 = arith.constant 0 : i32
    return %arg0, %c0_i32 : i32, i32
  }
}

</mosaic_0001>

<llo_original>
// kernel: tpu_custom_call.1
$region0: #{tpu_custom_call.1}
  #allocation0 [shape = 'u32[]', space=smem, size = 0x4, offset = 0x4, fixed_abs, tag = 'smem constant byte address 0x4 - core index']
  #allocation1 [shape = 'u32[144,128]{1,0:T(1,128)}', space=vmem, size = 0x12000, scoped, tag = 'internal scratch']
  %s0 = inlined_call_operand.vmem [shape: f32[8,32], index: 0, kind: input, shape index: {}]
  %s1 = inlined_call_operand.vmem [shape: s32[8,1], index: 1, kind: input, shape index: {}]
  %s2 = inlined_call_operand.vmem [shape: f32[8,1], index: 2, kind: input, shape index: {}]
  %s3 = inlined_call_operand.hbm [shape: f32[8,128], index: 3, kind: output, shape index: {}]
  %s4 = sld [smem:[#allocation0]]
  $region22: #{tpu_custom_call.1} parent=0
    _
  %s6 = ssub.s32 1, %s4
  %s7 = scalar_select 0, %s6, %s4
  $region1: #{tpu_custom_call.1} parent=0
    #allocation2 [shape = 'u8[4096]{0}', space=vmem, size = 0x1000, scoped, tag = 'output window, operand 0, single buffered']
    #allocation3 [shape = 's32[1]{0}', space=sflag, size = 0x4, scoped, tag = 'scoped memory for tpu_custom_call.1']
    %8 = vsyncpa [#allocation3], 0
    // Predicated region
    $region2: #{tpu_custom_call.1} parent=1 // pred_check
      _
    $region3: #{tpu_custom_call.1} parent=1 // pred_check_branch
      %10 = sbr.rel (0) target = $region5
    $region4: #{tpu_custom_call.1} parent=1 // pred_region
      _
    $region5: #{tpu_custom_call.1} parent=1 // pred_fallthru
      _
    // Predicated region
    $region6: #{tpu_custom_call.1} parent=1 // pred_check
      _
    $region7: #{tpu_custom_call.1} parent=1 // pred_check_branch
      %12 = sbr.rel (0) target = $region9
    $region8: #{tpu_custom_call.1} parent=1 // pred_region
      _
    $region9: #{tpu_custom_call.1} parent=1 // pred_fallthru
      _
    // Predicated region
    $region10: #{tpu_custom_call.1} parent=1 // pred_check
      _
    $region11: #{tpu_custom_call.1} parent=1 // pred_check_branch
      %14 = sbr.rel (0) target = $region13
    $region12: #{tpu_custom_call.1} parent=1 // pred_region
      _
    $region13: #{tpu_custom_call.1} parent=1 // pred_fallthru
      _
    %v15 = vld [vmem:[%s0] sm:$0xff]
    %vm16 = vcmask 261120
    %v17 = vsel %vm16, %v15, -inf
    %18 = vmax.xlane.f32.xlu0 %v17
    %v19 = vpop.xlane.xlu0 %18
    %v20 = vsub.f32 %v15, %v19
    %v21 = vmul.f32 %v20, 1.442695
    %v22 = vpow.pop %v21
    %v23 = vsel %vm16, %v22, 0.0
    %24 = vadd.xlane.f32.xlu0 %v23
    %v25 = vpop.xlane.xlu0 %24
    %v26 = vlog2.pop %v25
    %v27 = vmul.f32 %v26, 0.6931472
    %v28 = vld [vmem:[%s1] sm:$0xff]
    %v29 = vlaneseq
    %v30 = vand.u32 %v29, 127
    %31 = vset.pattern.permute.xlu0 0
    %32 = vperm.xlu0 %31, %v28
    %v33 = vpop.permute.xlu0 %32
    %vm34 = vcmp.eq.s32.totalorder %v33, %v30
    %v35 = vsel %vm34, %v20, 0.0
    %v36 = vsel %vm16, %v35, 0.0
    %37 = vadd.xlane.f32.xlu0 %v36
    %v38 = vpop.xlane.xlu0 %37
    %v39 = vsub.f32 %v38, %v27
    %s40 = smul.u32 0, 8
    %v41 = vlaneseq
    %v42 = vshrl.u32 %v41, 7
    %v43 = vstv %s40
    %v44 = vadd.s32 %v43, %v42
    %vm45 = vcmp.lt.s32.totalorder %v44, 8
    %v46 = vld [vmem:[%s2] sm:$0xff]
    %v47 = vadd.f32 %v39, %v46
    %v48 = vsel %vm45, %v47, 0.0
    %vm49 = vcmask 7168
    %v50 = vsel %vm49, %v48, 0.0
    %v51 = vrot.slane %v50, 4
    %v52 = vadd.f32 %v50, %v51
    %v53 = vrot.slane %v52, 2
    %v54 = vadd.f32 %v52, %v53
    %v55 = vrot.slane %v54, 1
    %v56 = vadd.f32 %v54, %v55
    %58 = vset.pattern.permute.xlu0 0
    %59 = vperm.xlu0 %58, %v56
    %v60 = vpop.permute.xlu0 %59
    %62 = vst [vmem:[#allocation2] sm:$0xff] %v60
    // Predicated region
    $region14: #{tpu_custom_call.1} parent=1 // pred_check
      _
    $region15: #{tpu_custom_call.1} parent=1 // pred_check_branch
      %64 = sbr.rel (0) target = $region17
    $region16: #{tpu_custom_call.1} parent=1 // pred_region
      %s66 = ssub.s32 128, 128
      %67 = vsyncadd [#allocation3], %s66
      %s69 = sshll.u32 [#allocation2], 4
      %s70 = int_to_ptr.vmem [resolvable:$true] %s69
      %72 = dma.vmem_to_hbm [thread:$0]  %s70, 128, %s3, [#allocation3]
    $region17: #{tpu_custom_call.1} parent=1 // pred_fallthru
      _
    // Predicated region
    $region18: #{tpu_custom_call.1} parent=1 // pred_check
      _
    $region19: #{tpu_custom_call.1} parent=1 // pred_check_branch
      %74 = sbr.rel (0) target = $region21
    $region20: #{tpu_custom_call.1} parent=1 // pred_region
      %75 = dma.done [#allocation3], 128
    $region21: #{tpu_custom_call.1} parent=1 // pred_fallthru
      _
    %76 = vsyncpa [#allocation3], 1

</llo_original>
